<compile_context>
chip_gen: v7x
topology: tpu7x:2x2x1
jax: 0.10.0
libtpu: 0.0.40
codegen_flags: <defaults>
</compile_context>

<pallas_src>
import jax
import jax.numpy as jnp
from jax import lax
from jax.experimental import pallas as pl
from jax.experimental.pallas import tpu as pltpu

_EPS = 1e-12  # F.normalize default eps


# ----------------------------------------------------------------------------- kernels
def _norm_linear_kernel_f32out(x_ref, w_ref, sx_ref, sw_ref, o_ref):
    """f32 output: accumulate the raw matmul directly into the resident output tile."""
    k = pl.program_id(2)

    @pl.when(k == 0)
    def _init():
        o_ref[...] = jnp.zeros_like(o_ref)

    # Raw matmul on the MXU; contract the shared K axis of BOTH operands so w is
    # used in its native [out, in] layout.
    o_ref[...] += lax.dot_general(
        x_ref[...], w_ref[...],
        dimension_numbers=(((1,), (1,)), ((), ())),
        preferred_element_type=jnp.float32,
    )

    @pl.when(k == pl.num_programs(2) - 1)
    def _finalize():
        # One multiply per output element by the precomputed reciprocal row norms.
        o_ref[...] = o_ref[...] * sx_ref[...] * sw_ref[...]


def _norm_linear_kernel_accout(x_ref, w_ref, sx_ref, sw_ref, o_ref, acc_ref):
    """Generic (non-f32) output: f32 VMEM accumulator scratch, cast at the end."""
    k = pl.program_id(2)

    @pl.when(k == 0)
    def _init():
        acc_ref[...] = jnp.zeros_like(acc_ref)

    acc_ref[...] += lax.dot_general(
        x_ref[...], w_ref[...],
        dimension_numbers=(((1,), (1,)), ((), ())),
        preferred_element_type=jnp.float32,
    )

    @pl.when(k == pl.num_programs(2) - 1)
    def _finalize():
        o_ref[...] = (acc_ref[...] * sx_ref[...] * sw_ref[...]).astype(o_ref.dtype)


# ----------------------------------------------------------------------------- wrapper
def _round_up(v: int, m: int) -> int:
    return (v + m - 1) // m * m


def _tile_and_pad(dim: int, preferred: int, align: int):
    """Pick a tile <= `preferred` (aligned to `align`) and the padded extent it divides."""
    aligned = _round_up(dim, align)
    if aligned <= preferred:
        return aligned, aligned           # single tile along this axis
    return preferred, _round_up(dim, preferred)


def norm_linear(x: jax.Array, weight: jax.Array, *, tm: int = 256, tn: int = 1024,
                tk: int = 1024, mxu_dtype=None, eps: float = _EPS) -> jax.Array:
    """x: [batch, in_features], weight: [out_features, in_features]."""
    batch, in_features = x.shape
    out_features, in_features_w = weight.shape
    assert in_features == in_features_w
    out_dtype = x.dtype

    # Tile selection + padding (M aligned to 8 sublanes, N/K aligned to 128 lanes so
    # output stores are lane-dense and the MXU sees well-shaped tiles).
    tm, m_pad = _tile_and_pad(batch, tm, 8)
    tn, n_pad = _tile_and_pad(out_features, tn, 128)
    tk, k_pad = _tile_and_pad(in_features, tk, 128)
    # NOTE: on v6e (128 MiB VMEM) tn=2048 / tm=512 can be pushed further; gate such
    # configs on pltpu.get_tpu_info().vmem_capacity_bytes before porting to v7x.

    xp = x if (m_pad, k_pad) == (batch, in_features) else jnp.pad(
        x, ((0, m_pad - batch), (0, k_pad - in_features)))
    wp = weight if (n_pad, k_pad) == (out_features, in_features) else jnp.pad(
        weight, ((0, n_pad - out_features), (0, k_pad - in_features)))

    # Reciprocal row norms, computed once, in exact f32 (zero padding does not change
    # the sums of squares of real rows; padded rows clamp to eps and multiply a zero
    # accumulator, then get sliced away).
    xf = xp.astype(jnp.float32)
    wf = wp.astype(jnp.float32)
    x_scale = lax.rsqrt(jnp.maximum(jnp.sum(xf * xf, axis=1, keepdims=True),
                                    eps * eps))                       # (m_pad, 1)
    w_scale = lax.rsqrt(jnp.maximum(jnp.sum(wf * wf, axis=1, keepdims=True),
                                    eps * eps)).T                     # (1, n_pad)

    # Opt-in reduced-precision MXU operands (norms above already taken from originals).
    if mxu_dtype is not None:
        xp = xp.astype(mxu_dtype)
        wp = wp.astype(mxu_dtype)

    grid = (m_pad // tm, n_pad // tn, k_pad // tk)

    use_direct = jnp.dtype(out_dtype) == jnp.dtype(jnp.float32)
    kernel = _norm_linear_kernel_f32out if use_direct else _norm_linear_kernel_accout
    scratch_shapes = [] if use_direct else [pltpu.VMEM((tm, tn), jnp.float32)]

    xb = jnp.dtype(xp.dtype).itemsize
    wb = jnp.dtype(wp.dtype).itemsize
    ob = jnp.dtype(out_dtype).itemsize
    # Actual pipeline footprint (double-buffered tiles) + scratch + generous headroom,
    # instead of a flat 48 MiB (too close to v7x's 64 MiB physical VMEM).
    vmem_bytes = (
        2 * tm * tk * xb + 2 * tn * tk * wb + 2 * tm * tn * ob
        + (0 if use_direct else tm * tn * 4)
        + 2 * (tm * 128 + 8 * tn) * 4          # lane/sublane-padded scale tiles
        + (8 << 20)                            # compiler headroom
    )
    vmem_limit = min(int(vmem_bytes), 100 * 1024 * 1024)

    out = pl.pallas_call(
        kernel,
        out_shape=jax.ShapeDtypeStruct((m_pad, n_pad), out_dtype),
        grid_spec=pltpu.PrefetchScalarGridSpec(
            num_scalar_prefetch=0,
            grid=grid,
            in_specs=[
                pl.BlockSpec((tm, tk), lambda i, j, k: (i, k)),   # x tile
                pl.BlockSpec((tn, tk), lambda i, j, k: (j, k)),   # w tile (native [out,in])
                pl.BlockSpec((tm, 1), lambda i, j, k: (i, 0)),    # 1/max(||x_row||, eps)
                pl.BlockSpec((1, tn), lambda i, j, k: (0, j)),    # 1/max(||w_row||, eps)
            ],
            out_specs=pl.BlockSpec((tm, tn), lambda i, j, k: (i, j)),
            scratch_shapes=scratch_shapes,
        ),
        compiler_params=pltpu.CompilerParams(
            dimension_semantics=("parallel", "parallel", "arbitrary"),
            vmem_limit_bytes=vmem_limit,
        ),
        cost_estimate=pl.CostEstimate(
            flops=2 * m_pad * n_pad * k_pad,
            transcendentals=0,
            bytes_accessed=(m_pad * k_pad * xb + n_pad * k_pad * wb
                            + m_pad * n_pad * ob + (m_pad + n_pad) * 4),
        ),
    )(xp, wp, x_scale, w_scale)

    if (m_pad, n_pad) != (batch, out_features):
        out = out[:batch, :out_features]
    return out


# ----------------------------------------------------------------------------- helpers
def xavier_uniform(key, out_features, in_features, dtype=jnp.float32):
    # nn.init.xavier_uniform_ for a 2D weight [out, in]:
    # bound = sqrt(6 / (fan_in + fan_out)), U(-bound, bound)
    bound = (6.0 / (in_features + out_features)) ** 0.5
    return jax.random.uniform(
        key, (out_features, in_features), dtype=dtype, minval=-bound, maxval=bound
    )


def reference_norm_linear(x, weight, eps=_EPS):
    x32 = x.astype(jnp.float32)
    w32 = weight.astype(jnp.float32)
    xn = x32 / jnp.maximum(jnp.linalg.norm(x32, axis=-1, keepdims=True), eps)
    wn = w32 / jnp.maximum(jnp.linalg.norm(w32, axis=-1, keepdims=True), eps)
    return jnp.einsum("mk,nk->mn", xn, wn, precision=jax.lax.Precision.HIGHEST)


if __name__ == "__main__":
    key = jax.random.PRNGKey(0)
    k1, k2, k3, k4, k5, k6 = jax.random.split(key, 6)

    tol_f32 = dict(atol=2e-3, rtol=2e-3)
    tol_bf16 = dict(atol=2e-2, rtol=2e-2)

    # Test 1: tiny NormLinear (single grid step; exercises M/N/K padding to 8/128/128).
    b1, in1, out1 = 8, 32, 16
    x1 = jax.random.normal(k1, (b1, in1), dtype=jnp.float32)
    w1 = xavier_uniform(k2, out1, in1)
    y1 = jax.block_until_ready(norm_linear(x1, w1))
    assert y1.shape == (b1, out1)
    assert jnp.allclose(y1, reference_norm_linear(x1, w1), **tol_f32), "mismatch (test 1)"

    # Test 2: K-tiled accumulator path with odd (padded) N and K (grid = (1, 1, 2)).
    b2, in2, out2 = 16, 1500, 300
    x2 = jax.random.normal(k3, (b2, in2), dtype=jnp.float32)
    w2 = xavier_uniform(k4, out2, in2)
    y2 = jax.block_until_ready(norm_linear(x2, w2))
    assert y2.shape == (b2, out2)
    assert jnp.allclose(y2, reference_norm_linear(x2, w2), **tol_f32), "mismatch (test 2)"

    # Test 3: bf16 inputs/output (scratch-accumulator path, bf16 MXU operands).
    b3, in3, out3 = 16, 256, 200
    x3 = jax.random.normal(k5, (b3, in3), dtype=jnp.float32).astype(jnp.bfloat16)
    w3 = xavier_uniform(k6, out3, in3).astype(jnp.bfloat16)
    y3 = jax.block_until_ready(norm_linear(x3, w3))
    assert y3.shape == (b3, out3)
    assert jnp.allclose(y3.astype(jnp.float32), reference_norm_linear(x3, w3),
                        **tol_bf16), "mismatch (test 3)"

    # Test 4: opt-in bf16 MXU operands with f32 inputs/output (norms stay f32-exact).
    y4 = jax.block_until_ready(norm_linear(x2, w2, mxu_dtype=jnp.bfloat16))
    assert y4.shape == (b2, out2)
    assert jnp.allclose(y4, reference_norm_linear(x2, w2), **tol_bf16), "mismatch (test 4)"

    print("KERNEL_OK")
</pallas_src>

<mosaic_0001>
module attributes {stable_mosaic.version = 11 : i64} {
  func.func @_norm_linear_kernel_f32out(%arg0: i32, %arg1: i32, %arg2: i32, %arg3: memref<8x128xf32, #tpu.memory_space<vmem>>, %arg4: memref<128x128xf32, #tpu.memory_space<vmem>>, %arg5: memref<8x1xf32, #tpu.memory_space<vmem>>, %arg6: memref<1x128xf32, #tpu.memory_space<vmem>>, %arg7: memref<8x128xf32, #tpu.memory_space<vmem>>) attributes {dimension_semantics = [#tpu.dimension_semantics<parallel>, #tpu.dimension_semantics<parallel>, #tpu.dimension_semantics<arbitrary>], iteration_bounds = array<i64: 1, 1, 1>, scalar_prefetch = 0 : i64, scratch_operands = 0 : i64, tpu.core_type = #tpu.core_type<tc>, window_params = [{transform_indices = @transform_0, window_bounds = array<i64: 8, 128>}, {transform_indices = @transform_1, window_bounds = array<i64: 128, 128>}, {transform_indices = @transform_2, window_bounds = array<i64: 8, 1>}, {transform_indices = @transform_3, window_bounds = array<i64: 1, 128>}, {transform_indices = @transform_4, window_bounds = array<i64: 8, 128>}]} {
    %c0_i32 = arith.constant 0 : i32
    %0 = arith.cmpi eq, %arg2, %c0_i32 : i32
    %1 = arith.extui %0 : i1 to i32
    %c0_i32_0 = arith.constant 0 : i32
    %2 = arith.cmpi ne, %1, %c0_i32_0 : i32
    scf.if %2 {
      %cst_10 = arith.constant 0.000000e+00 : f32
      %12 = vector.broadcast %cst_10 : f32 to vector<8x128xf32>
      %c0_11 = arith.constant 0 : index
      %c0_12 = arith.constant 0 : index
      %13 = vector.load %arg7[%c0_11, %c0_12] : memref<8x128xf32, #tpu.memory_space<vmem>>, vector<8x128xf32>
      tpu.vector_store %arg7[%c0_11, %c0_12], %12 {strides = array<i32>} : memref<8x128xf32, #tpu.memory_space<vmem>>, vector<8x128xf32>,
    } else {
    }
    %c0 = arith.constant 0 : index
    %c0_1 = arith.constant 0 : index
    %3 = vector.load %arg7[%c0, %c0_1] : memref<8x128xf32, #tpu.memory_space<vmem>>, vector<8x128xf32>
    %c0_2 = arith.constant 0 : index
    %c0_3 = arith.constant 0 : index
    %4 = vector.load %arg3[%c0_2, %c0_3] : memref<8x128xf32, #tpu.memory_space<vmem>>, vector<8x128xf32>
    %c0_4 = arith.constant 0 : index
    %c0_5 = arith.constant 0 : index
    %5 = vector.load %arg4[%c0_4, %c0_5] : memref<128x128xf32, #tpu.memory_space<vmem>>, vector<128x128xf32>
    %cst = arith.constant dense<0.000000e+00> : vector<8x128xf32>
    %6 = tpu.matmul %4, %5, %cst {dimension_numbers = #tpu.dot_dimension_numbers<[1], [1], [0], [0], [0, 0, 1, 0], [], []>} : vector<8x128xf32>, vector<128x128xf32>, vector<8x128xf32> -> vector<8x128xf32>
    %7 = arith.addf %3, %6 : vector<8x128xf32>
    %c0_6 = arith.constant 0 : index
    %c0_7 = arith.constant 0 : index
    %8 = vector.load %arg7[%c0_6, %c0_7] : memref<8x128xf32, #tpu.memory_space<vmem>>, vector<8x128xf32>
    tpu.vector_store %arg7[%c0_6, %c0_7], %7 {strides = array<i32>} : memref<8x128xf32, #tpu.memory_space<vmem>>, vector<8x128xf32>,
    %c0_i32_8 = arith.constant 0 : i32
    %9 = arith.cmpi eq, %arg2, %c0_i32_8 : i32
    %10 = arith.extui %9 : i1 to i32
    %c0_i32_9 = arith.constant 0 : i32
    %11 = arith.cmpi ne, %10, %c0_i32_9 : i32
    scf.if %11 {
      %c0_10 = arith.constant 0 : index
      %c0_11 = arith.constant 0 : index
      %12 = vector.load %arg7[%c0_10, %c0_11] : memref<8x128xf32, #tpu.memory_space<vmem>>, vector<8x128xf32>
      %c0_12 = arith.constant 0 : index
      %c0_13 = arith.constant 0 : index
      %13 = vector.load %arg5[%c0_12, %c0_13] : memref<8x1xf32, #tpu.memory_space<vmem>>, vector<8x1xf32>
      %14 = vector.broadcast %13 : vector<8x1xf32> to vector<8x128xf32>
      %15 = arith.mulf %12, %14 : vector<8x128xf32>
      %c0_14 = arith.constant 0 : index
      %c0_15 = arith.constant 0 : index
      %16 = vector.load %arg6[%c0_14, %c0_15] : memref<1x128xf32, #tpu.memory_space<vmem>>, vector<1x128xf32>
      %17 = vector.broadcast %16 : vector<1x128xf32> to vector<8x128xf32>
      %18 = arith.mulf %15, %17 : vector<8x128xf32>
      %c0_16 = arith.constant 0 : index
      %c0_17 = arith.constant 0 : index
      %19 = vector.load %arg7[%c0_16, %c0_17] : memref<8x128xf32, #tpu.memory_space<vmem>>, vector<8x128xf32>
      tpu.vector_store %arg7[%c0_16, %c0_17], %18 {strides = array<i32>} : memref<8x128xf32, #tpu.memory_space<vmem>>, vector<8x128xf32>,
    } else {
    }
    return
  }
  func.func @transform_0(%arg0: i32, %arg1: i32, %arg2: i32) -> (i32, i32) {
    %c0_i32 = arith.constant 0 : i32
    return %arg0, %arg2 : i32, i32
  }
  func.func @transform_1(%arg0: i32, %arg1: i32, %arg2: i32) -> (i32, i32) {
    %c0_i32 = arith.constant 0 : i32
    return %arg1, %arg2 : i32, i32
  }
  func.func @transform_2(%arg0: i32, %arg1: i32, %arg2: i32) -> (i32, i32) {
    %c0_i32 = arith.constant 0 : i32
    %c0_i32_0 = arith.constant 0 : i32
    return %arg0, %c0_i32 : i32, i32
  }
  func.func @transform_3(%arg0: i32, %arg1: i32, %arg2: i32) -> (i32, i32) {
    %c0_i32 = arith.constant 0 : i32
    %c0_i32_0 = arith.constant 0 : i32
    return %c0_i32, %arg1 : i32, i32
  }
  func.func @transform_4(%arg0: i32, %arg1: i32, %arg2: i32) -> (i32, i32) {
    %c0_i32 = arith.constant 0 : i32
    return %arg0, %arg1 : i32, i32
  }
}

</mosaic_0001>

<llo_original>
// kernel: tpu_custom_call.1
$region0: #{tpu_custom_call.1}
  #allocation0 [shape = 'u32[]', space=smem, size = 0x4, offset = 0x4, fixed_abs, tag = 'smem constant byte address 0x4 - core index']
  #allocation1 [shape = 'u32[144,128]{1,0:T(1,128)}', space=vmem, size = 0x12000, scoped, tag = 'internal scratch']
  %s0 = inlined_call_operand.vmem [shape: f32[8,128], index: 0, kind: input, shape index: {}]
  %s1 = inlined_call_operand.hbm [shape: f32[128,128], index: 1, kind: input, shape index: {}]
  %s2 = inlined_call_operand.vmem [shape: f32[8,1], index: 2, kind: input, shape index: {}]
  %s3 = inlined_call_operand.vmem [shape: f32[1,128], index: 3, kind: input, shape index: {}]
  %s4 = inlined_call_operand.hbm [shape: f32[8,128], index: 4, kind: output, shape index: {}]
  %s5 = sld [smem:[#allocation0]]
  $region38: #{tpu_custom_call.1} parent=0
    _
  %s7 = ssub.s32 1, %s5
  %s8 = scalar_select 0, %s7, %s5
  $region1: #{tpu_custom_call.1} parent=0
    #allocation2 [shape = 'u8[65536]{0}', space=vmem, size = 0x10000, scoped, tag = 'input window, operand 1, single buffered']
    #allocation3 [shape = 's32[1]{0}', space=sflag, size = 0x4, scoped, tag = 'scoped memory for tpu_custom_call.1']
    #allocation4 [shape = 's32[1]{0}', space=sflag, size = 0x4, scoped, tag = 'scoped memory for tpu_custom_call.1']
    #allocation5 [shape = 'u8[4096]{0}', space=vmem, size = 0x1000, scoped, tag = 'output window, operand 0, single buffered']
    %9 = vsyncpa [#allocation3], 0
    %10 = vsyncpa [#allocation4], 0
    // Predicated region
    $region2: #{tpu_custom_call.1} parent=1 // pred_check
      _
    $region3: #{tpu_custom_call.1} parent=1 // pred_check_branch
      %12 = sbr.rel (0) target = $region5
    $region4: #{tpu_custom_call.1} parent=1 // pred_region
      _
    $region5: #{tpu_custom_call.1} parent=1 // pred_fallthru
      _
    // Predicated region
    $region6: #{tpu_custom_call.1} parent=1 // pred_check
      _
    $region7: #{tpu_custom_call.1} parent=1 // pred_check_branch
      %14 = sbr.rel (0) target = $region9
    $region8: #{tpu_custom_call.1} parent=1 // pred_region
      %s16 = ssub.s32 2048, 2048
      %17 = vsyncadd [#allocation3], %s16
      %s18 = sshll.u32 [#allocation2], 4
      %s19 = int_to_ptr.vmem [resolvable:$true] %s18
      %24 = dma.hbm_to_vmem [thread:$0]  %s1, 2048, %s19, [#allocation3], 128, 128, 8
    $region9: #{tpu_custom_call.1} parent=1 // pred_fallthru
      _
    // Predicated region
    $region10: #{tpu_custom_call.1} parent=1 // pred_check
      _
    $region11: #{tpu_custom_call.1} parent=1 // pred_check_branch
      %26 = sbr.rel (0) target = $region13
    $region12: #{tpu_custom_call.1} parent=1 // pred_region
      _
    $region13: #{tpu_custom_call.1} parent=1 // pred_fallthru
      _
    // Predicated region
    $region14: #{tpu_custom_call.1} parent=1 // pred_check
      _
    $region15: #{tpu_custom_call.1} parent=1 // pred_check_branch
      %28 = sbr.rel (0) target = $region17
    $region16: #{tpu_custom_call.1} parent=1 // pred_region
      _
    $region17: #{tpu_custom_call.1} parent=1 // pred_fallthru
      _
    // Predicated region
    $region18: #{tpu_custom_call.1} parent=1 // pred_check
      _
    $region19: #{tpu_custom_call.1} parent=1 // pred_check_branch
      %30 = sbr.rel (0) target = $region21
    $region20: #{tpu_custom_call.1} parent=1 // pred_region
      %31 = dma.done [#allocation3], 2048
    $region21: #{tpu_custom_call.1} parent=1 // pred_fallthru
      _
    %p32 = scmp.eq.s32.totalorder 0, 0
    // Predicated region
    $region22: #{tpu_custom_call.1} parent=1 // pred_check
      %p33 = pneg %p32
    $region23: #{tpu_custom_call.1} parent=1 // pred_check_branch
      %35 = sbr.rel (%p33) target = $region25
    $region24: #{tpu_custom_call.1} parent=1 // pred_region
      %36 = vst [vmem:[#allocation5] sm:$0xff] 0.0
    $region25: #{tpu_custom_call.1} parent=1 // pred_fallthru
      _
    %v37 = vld [vmem:[#allocation5] sm:$0xff]
    %v38 = vld [vmem:[%s0] sm:$0xff]
    %v39 = vld [vmem:[#allocation2] sm:$0xff]
    %v40 = vld [vmem:[#allocation2 + $0x8] sm:$0xff]
    %v41 = vld [vmem:[#allocation2 + $0x10] sm:$0xff]
    %v42 = vld [vmem:[#allocation2 + $0x18] sm:$0xff]
    %v43 = vld [vmem:[#allocation2 + $0x20] sm:$0xff]
    %v44 = vld [vmem:[#allocation2 + $0x28] sm:$0xff]
    %v45 = vld [vmem:[#allocation2 + $0x30] sm:$0xff]
    %v46 = vld [vmem:[#allocation2 + $0x38] sm:$0xff]
    %v47 = vld [vmem:[#allocation2 + $0x40] sm:$0xff]
    %v48 = vld [vmem:[#allocation2 + $0x48] sm:$0xff]
    %v49 = vld [vmem:[#allocation2 + $0x50] sm:$0xff]
    %v50 = vld [vmem:[#allocation2 + $0x58] sm:$0xff]
    %v51 = vld [vmem:[#allocation2 + $0x60] sm:$0xff]
    %v52 = vld [vmem:[#allocation2 + $0x68] sm:$0xff]
    %v53 = vld [vmem:[#allocation2 + $0x70] sm:$0xff]
    %v54 = vld [vmem:[#allocation2 + $0x78] sm:$0xff]
    %55 = vmatprep.subr.mxu0 0.0
    %56 = vmatpush1.xpose.msra.mxu0 %v39
    %57 = vmatprep.subr.mxu0 0.0
    %58 = vmatpush1.xpose.msra.mxu0 %v40
    %59 = vmatprep.subr.mxu0 0.0
    %60 = vmatpush1.xpose.msra.mxu0 %v41
    %61 = vmatprep.subr.mxu0 0.0
    %62 = vmatpush1.xpose.msra.mxu0 %v42
    %63 = vmatprep.subr.mxu0 0.0
    %64 = vmatpush1.xpose.msra.mxu0 %v43
    %65 = vmatprep.subr.mxu0 0.0
    %66 = vmatpush1.xpose.msra.mxu0 %v44
    %67 = vmatprep.subr.mxu0 0.0
    %68 = vmatpush1.xpose.msra.mxu0 %v45
    %69 = vmatprep.subr.mxu0 0.0
    %70 = vmatpush1.xpose.msra.mxu0 %v46
    %71 = vmatprep.subr.mxu0 0.0
    %72 = vmatpush1.xpose.msra.mxu0 %v47
    %73 = vmatprep.subr.mxu0 0.0
    %74 = vmatpush1.xpose.msra.mxu0 %v48
    %75 = vmatprep.subr.mxu0 0.0
    %76 = vmatpush1.xpose.msra.mxu0 %v49
    %77 = vmatprep.subr.mxu0 0.0
    %78 = vmatpush1.xpose.msra.mxu0 %v50
    %79 = vmatprep.subr.mxu0 0.0
    %80 = vmatpush1.xpose.msra.mxu0 %v51
    %81 = vmatprep.subr.mxu0 0.0
    %82 = vmatpush1.xpose.msra.mxu0 %v52
    %83 = vmatprep.subr.mxu0 0.0
    %84 = vmatpush1.xpose.msra.mxu0 %v53
    %85 = vmatprep.subr.mxu0 0.0
    %86 = vmatpush1.xpose.msra.mxu0 %v54
    %87 = vmatprep.subr.mxu0 0.0
    %88 = vmatpush1.xpose.msra.mxu0 0.0
    %89 = vmatprep.subr.mxu0 0.0
    %90 = vmatpush1.xpose.msra.mxu0 0.0
    %91 = vmatprep.subr.mxu0 0.0
    %92 = vmatpush1.xpose.msra.mxu0 0.0
    %93 = vmatprep.subr.mxu0 0.0
    %94 = vmatpush1.xpose.msra.mxu0 0.0
    %95 = vmatprep.subr.mxu0 0.0
    %96 = vmatpush1.xpose.msra.mxu0 0.0
    %97 = vmatprep.subr.mxu0 0.0
    %98 = vmatpush1.xpose.msra.mxu0 0.0
    %99 = vmatprep.subr.mxu0 0.0
    %100 = vmatpush1.xpose.msra.mxu0 0.0
    %101 = vmatprep.subr.mxu0 0.0
    %102 = vmatpush1.xpose.msra.mxu0 0.0
    %103 = vmatprep.subr.mxu0 0.0
    %104 = vmatpush1.xpose.msra.mxu0 0.0
    %105 = vmatprep.subr.mxu0 0.0
    %106 = vmatpush1.xpose.msra.mxu0 0.0
    %107 = vmatprep.subr.mxu0 0.0
    %108 = vmatpush1.xpose.msra.mxu0 0.0
    %109 = vmatprep.subr.mxu0 0.0
    %110 = vmatpush1.xpose.msra.mxu0 0.0
    %111 = vmatprep.subr.mxu0 0.0
    %112 = vmatpush1.xpose.msra.mxu0 0.0
    %113 = vmatprep.subr.mxu0 0.0
    %114 = vmatpush1.xpose.msra.mxu0 0.0
    %115 = vmatprep.subr.mxu0 0.0
    %116 = vmatpush1.xpose.msra.mxu0 0.0
    %117 = vmatprep.subr.mxu0 0.0
    %118 = vmatpush1.xpose.msra.mxu0 0.0
    %119 = vmatprep.mubr.f32.mxu0 0.0
    %120 = vmatmul.mubr.f32.gmra.mrb[0].mxu0 %v38
    %v121 = vpop.f32.mrb[0].mxu0
    %v122 = vadd.f32 0.0, %v121
    %v123 = vpop.f32.mrb[0].mxu0
    %124 = vdwg.mxu0
    %v125 = vadd.f32 %v37, %v122
    %126 = vst [vmem:[#allocation5] sm:$0xff] %v125
    // Predicated region
    $region26: #{tpu_custom_call.1} parent=1 // pred_check
      %p127 = pneg %p32
    $region27: #{tpu_custom_call.1} parent=1 // pred_check_branch
      %129 = sbr.rel (%p127) target = $region29
    $region28: #{tpu_custom_call.1} parent=1 // pred_region
      %v130 = vld [vmem:[#allocation5] sm:$0xff]
      %v131 = vld [vmem:[%s2] sm:$0xff]
      %133 = vset.pattern.permute.xlu0 0
      %134 = vperm.xlu0 %133, %v131
      %v135 = vpop.permute.xlu0 %134
      %v137 = vmul.f32 %v130, %v135
      %v138 = vld [vmem:[%s3] sm:$0x1]
      %v140 = vlaneseq
      %v141 = vshrl.u32 %v140, 7
      %v142 = vsub.s32 0, %v141
      %v143 = vrot.slane %v138, %v142
      %v145 = vmul.f32 %v137, %v143
      %146 = vst [vmem:[#allocation5] sm:$0xff] %v145
    $region29: #{tpu_custom_call.1} parent=1 // pred_fallthru
      _
    // Predicated region
    $region30: #{tpu_custom_call.1} parent=1 // pred_check
      _
    $region31: #{tpu_custom_call.1} parent=1 // pred_check_branch
      %148 = sbr.rel (0) target = $region33
    $region32: #{tpu_custom_call.1} parent=1 // pred_region
      %s150 = ssub.s32 128, 128
      %151 = vsyncadd [#allocation4], %s150
      %s153 = sshll.u32 [#allocation5], 4
      %s154 = int_to_ptr.vmem [resolvable:$true] %s153
      %156 = dma.vmem_to_hbm [thread:$0]  %s154, 128, %s4, [#allocation4]
    $region33: #{tpu_custom_call.1} parent=1 // pred_fallthru
      _
    // Predicated region
    $region34: #{tpu_custom_call.1} parent=1 // pred_check
      _
    $region35: #{tpu_custom_call.1} parent=1 // pred_check_branch
      %158 = sbr.rel (0) target = $region37
    $region36: #{tpu_custom_call.1} parent=1 // pred_region
      %159 = dma.done [#allocation4], 128
    $region37: #{tpu_custom_call.1} parent=1 // pred_fallthru
      _
    %160 = vsyncpa [#allocation3], 1
    %161 = vsyncpa [#allocation4], 1

</llo_original>
